<compile_context>
chip_gen: v7x
topology: tpu7x:2x2x1
jax: 0.10.0
libtpu: 0.0.40
codegen_flags: <defaults>
</compile_context>

<pallas_src>
import numpy as np
import jax
import jax.numpy as jnp
from jax.experimental import pallas as pl
from jax.experimental.pallas import tpu as pltpu


def _build_relative_position_index(window_size):
    """Mirrors RelativePositionBias3D.__init__ index construction (numpy glue)."""
    wh, ww, wd = window_size
    num_relative_distance = (2 * wh - 1) * (2 * ww - 1) * (2 * wd - 1) + 3

    coords = np.stack(
        np.meshgrid(np.arange(wh), np.arange(ww), np.arange(wd), indexing="ij")
    )  # (3, wh, ww, wd)
    coords_flatten = coords.reshape(3, -1)  # (3, M)
    relative_coords = coords_flatten[:, :, None] - coords_flatten[:, None, :]  # (3, M, M)
    relative_coords = relative_coords.transpose(1, 2, 0).copy()  # (M, M, 3)
    relative_coords[:, :, 0] += wh - 1
    relative_coords[:, :, 1] += ww - 1
    relative_coords[:, :, 2] += wd - 1
    relative_coords[:, :, 0] *= (2 * ww - 1) * (2 * wd - 1)
    relative_coords[:, :, 1] *= 2 * wd - 1

    n_tok = wh * ww * wd + 1
    relative_position_index = np.zeros((n_tok, n_tok), dtype=np.int64)
    relative_position_index[1:, 1:] = relative_coords.sum(-1)
    relative_position_index[0, 0:] = num_relative_distance - 3
    relative_position_index[0:, 0] = num_relative_distance - 2
    relative_position_index[0, 0] = num_relative_distance - 1
    return relative_position_index.astype(np.int32), num_relative_distance


def _round_up(x, m):
    return ((x + m - 1) // m) * m


def _gather_bias_kernel(idx_ref, table_ref, out_ref):
    # idx_ref:   (1, TILE_NN)  int32   lane-dense (already permute-folded) indices
    # table_ref: (H, TILE_R)   f32     transposed bias-table tile (resident, small)
    # out_ref:   (H, TILE_NN)  f32     lane-dense output tile, resident across R axis
    k = pl.program_id(1)
    tile_r = table_ref.shape[1]
    tile_nn = idx_ref.shape[1]

    @pl.when(k == 0)
    def _():
        out_ref[...] = jnp.zeros_like(out_ref)

    idx = idx_ref[...]                                                     # (1, TILE_NN)
    # Global table-row id carried by each sublane of this R tile.
    row = jax.lax.broadcasted_iota(jnp.int32, (tile_r, tile_nn), 0) + k * tile_r
    onehot = (row == idx).astype(table_ref.dtype)                          # (TILE_R, TILE_NN)
    # (H, TILE_R) @ (TILE_R, TILE_NN) -> (H, TILE_NN); exact gather (one-hot is 0/1).
    out_ref[...] += jnp.dot(table_ref[...], onehot,
                            preferred_element_type=jnp.float32)


def relative_position_bias_3d(table, rel_pos_index, *, tile_nn=None, tile_r=None):
    """Pallas-backed forward of RelativePositionBias3D.

    table:         (num_relative_distance, num_heads) float32
    rel_pos_index: (N, N) int32 with N = Wh*Ww*Wd + 1
    returns:       (num_heads, N, N) float32  == torch .permute(2, 1, 0) output
    """
    n_tok = rel_pos_index.shape[0]
    r, num_heads = table.shape
    nn = n_tok * n_tok

    # Tile sizes: lane-dim tiles multiples of 128, conservative enough for
    # v7x's smaller (64 MiB physical / 32 MiB scoped) VMEM:
    #   one-hot temp <= TILE_R * TILE_NN * 4 B = 512 * 1024 * 4 = 2 MiB.
    if tile_nn is None:
        tile_nn = 1024 if nn > 1024 else _round_up(nn, 128)
    tile_nn = _round_up(tile_nn, 128)
    if tile_r is None:
        tile_r = min(_round_up(r, 128), 512)
    tile_r = _round_up(tile_r, 128)

    nn_pad = _round_up(nn, tile_nn)
    r_pad = _round_up(r, tile_r)

    # Fold the final .permute(2, 1, 0) into the gather:
    #   out[h, a, b] = table[idx[b, a], h]  ->  gather with idx transposed,
    # output laid out (H, NN) lane-dense.  Padding indices point at row 0
    # (valid); the padded output lanes are sliced off below.
    idx_t = jnp.asarray(rel_pos_index, dtype=jnp.int32).T.reshape(-1)        # (NN,)
    idx_lane = jnp.pad(idx_t, (0, nn_pad - nn)).reshape(1, nn_pad)           # (1, NN_pad)

    # Transposed table, zero-padded rows beyond R are never selected.
    table_t = jnp.pad(table.T, ((0, 0), (0, r_pad - r)))                     # (H, R_pad)

    grid = (nn_pad // tile_nn, r_pad // tile_r)

    out_padded = pl.pallas_call(
        _gather_bias_kernel,
        out_shape=jax.ShapeDtypeStruct((num_heads, nn_pad), table.dtype),
        grid_spec=pltpu.PrefetchScalarGridSpec(
            num_scalar_prefetch=0,
            grid=grid,
            in_specs=[
                pl.BlockSpec((1, tile_nn), lambda i, k: (0, i)),
                pl.BlockSpec((num_heads, tile_r), lambda i, k: (0, k)),
            ],
            out_specs=pl.BlockSpec((num_heads, tile_nn), lambda i, k: (0, i)),
        ),
        compiler_params=pltpu.CompilerParams(
            dimension_semantics=("parallel", "arbitrary")),
    )(idx_lane, table_t)

    # Glue: strip lane padding, reshape to (H, N, N).  No transpose needed —
    # the permute was folded into the kernel's output layout.
    return out_padded[:, :nn].reshape(num_heads, n_tok, n_tok)


def _reference(table, rel_idx, n_tok, num_heads):
    """Pure-JAX forward matching the torch semantics exactly (permute(2,1,0))."""
    return jnp.transpose(
        table[rel_idx.reshape(-1)].reshape(n_tok, n_tok, num_heads), (2, 1, 0)
    )


if __name__ == "__main__":
    key = jax.random.PRNGKey(0)

    # --- Case 1: tiny window, single tile in both grid axes -----------------
    window_size = (2, 2, 2)
    num_heads = 4
    rel_idx_np, num_rel_dist = _build_relative_position_index(window_size)
    n_tok = window_size[0] * window_size[1] * window_size[2] + 1  # 9

    key, k1 = jax.random.split(key)
    table = jax.random.normal(k1, (num_rel_dist, num_heads), dtype=jnp.float32)
    rel_idx = jnp.asarray(rel_idx_np)

    out = relative_position_bias_3d(table, rel_idx)
    out = jax.block_until_ready(out)
    ref = _reference(table, rel_idx, n_tok, num_heads)
    assert out.shape == (num_heads, n_tok, n_tok), out.shape
    assert out.dtype == jnp.float32
    np.testing.assert_allclose(np.asarray(out), np.asarray(ref), rtol=1e-6, atol=1e-6)

    # --- Case 2: larger window, forces multi-tile grid on BOTH axes ---------
    window_size = (4, 4, 4)
    num_heads = 8
    rel_idx_np, num_rel_dist = _build_relative_position_index(window_size)  # R = 346
    n_tok = window_size[0] * window_size[1] * window_size[2] + 1            # 65

    key, k2 = jax.random.split(key)
    table = jax.random.normal(k2, (num_rel_dist, num_heads), dtype=jnp.float32)
    rel_idx = jnp.asarray(rel_idx_np)

    # tile_nn=512 -> 9 NN tiles; tile_r=128 -> 3 R tiles (exercises accumulation).
    out = relative_position_bias_3d(table, rel_idx, tile_nn=512, tile_r=128)
    out = jax.block_until_ready(out)
    ref = _reference(table, rel_idx, n_tok, num_heads)
    assert out.shape == (num_heads, n_tok, n_tok), out.shape
    np.testing.assert_allclose(np.asarray(out), np.asarray(ref), rtol=1e-6, atol=1e-6)

    print("KERNEL_OK")
</pallas_src>

<mosaic_0001>
module attributes {stable_mosaic.version = 11 : i64} {
  func.func @_gather_bias_kernel(%arg0: i32, %arg1: i32, %arg2: memref<1x128xi32, #tpu.memory_space<vmem>>, %arg3: memref<4x128xf32, #tpu.memory_space<vmem>>, %arg4: memref<4x128xf32, #tpu.memory_space<vmem>>) attributes {dimension_semantics = [#tpu.dimension_semantics<parallel>, #tpu.dimension_semantics<arbitrary>], iteration_bounds = array<i64: 1, 1>, scalar_prefetch = 0 : i64, scratch_operands = 0 : i64, tpu.core_type = #tpu.core_type<tc>, window_params = [{transform_indices = @transform_0, window_bounds = array<i64: 1, 128>}, {transform_indices = @transform_1, window_bounds = array<i64: 4, 128>}, {transform_indices = @transform_2, window_bounds = array<i64: 4, 128>}]} {
    %c0_i32 = arith.constant 0 : i32
    %0 = arith.cmpi eq, %arg1, %c0_i32 : i32
    %1 = arith.extui %0 : i1 to i32
    %c0_i32_0 = arith.constant 0 : i32
    %2 = arith.cmpi ne, %1, %c0_i32_0 : i32
    scf.if %2 {
      %cst_8 = arith.constant 0.000000e+00 : f32
      %17 = vector.broadcast %cst_8 : f32 to vector<4x128xf32>
      %c0_9 = arith.constant 0 : index
      %c0_10 = arith.constant 0 : index
      %18 = vector.load %arg4[%c0_9, %c0_10] : memref<4x128xf32, #tpu.memory_space<vmem>>, vector<4x128xf32>
      tpu.vector_store %arg4[%c0_9, %c0_10], %17 {strides = array<i32>} : memref<4x128xf32, #tpu.memory_space<vmem>>, vector<4x128xf32>,
    } else {
    }
    %c0 = arith.constant 0 : index
    %c0_1 = arith.constant 0 : index
    %3 = vector.load %arg2[%c0, %c0_1] : memref<1x128xi32, #tpu.memory_space<vmem>>, vector<1x128xi32>
    %4 = tpu.iota {dimensions = array<i32: 0>} : vector<128x128xi32>
    %c128_i32 = arith.constant 128 : i32
    %5 = arith.muli %arg1, %c128_i32 : i32
    %6 = vector.broadcast %5 : i32 to vector<128x128xi32>
    %7 = arith.addi %4, %6 : vector<128x128xi32>
    %8 = vector.broadcast %3 : vector<1x128xi32> to vector<128x128xi32>
    %9 = arith.cmpi eq, %7, %8 : vector<128x128xi32>
    %10 = arith.extui %9 : vector<128x128xi1> to vector<128x128xi32>
    %11 = arith.sitofp %10 : vector<128x128xi32> to vector<128x128xf32>
    %c0_2 = arith.constant 0 : index
    %c0_3 = arith.constant 0 : index
    %12 = vector.load %arg4[%c0_2, %c0_3] : memref<4x128xf32, #tpu.memory_space<vmem>>, vector<4x128xf32>
    %c0_4 = arith.constant 0 : index
    %c0_5 = arith.constant 0 : index
    %13 = vector.load %arg3[%c0_4, %c0_5] : memref<4x128xf32, #tpu.memory_space<vmem>>, vector<4x128xf32>
    %cst = arith.constant dense<0.000000e+00> : vector<4x128xf32>
    %14 = tpu.matmul %13, %11, %cst {dimension_numbers = #tpu.dot_dimension_numbers<[1], [0], [0], [1], [0, 0, 1, 1], [], []>} : vector<4x128xf32>, vector<128x128xf32>, vector<4x128xf32> -> vector<4x128xf32>
    %15 = arith.addf %12, %14 : vector<4x128xf32>
    %c0_6 = arith.constant 0 : index
    %c0_7 = arith.constant 0 : index
    %16 = vector.load %arg4[%c0_6, %c0_7] : memref<4x128xf32, #tpu.memory_space<vmem>>, vector<4x128xf32>
    tpu.vector_store %arg4[%c0_6, %c0_7], %15 {strides = array<i32>} : memref<4x128xf32, #tpu.memory_space<vmem>>, vector<4x128xf32>,
    return
  }
  func.func @transform_0(%arg0: i32, %arg1: i32) -> (i32, i32) {
    %c0_i32 = arith.constant 0 : i32
    %c0_i32_0 = arith.constant 0 : i32
    return %c0_i32, %arg0 : i32, i32
  }
  func.func @transform_1(%arg0: i32, %arg1: i32) -> (i32, i32) {
    %c0_i32 = arith.constant 0 : i32
    %c0_i32_0 = arith.constant 0 : i32
    return %c0_i32, %arg1 : i32, i32
  }
  func.func @transform_2(%arg0: i32, %arg1: i32) -> (i32, i32) {
    %c0_i32 = arith.constant 0 : i32
    %c0_i32_0 = arith.constant 0 : i32
    return %c0_i32, %arg0 : i32, i32
  }
}

</mosaic_0001>

<llo_original>
// kernel: tpu_custom_call.1
$region0: #{tpu_custom_call.1}
  #allocation0 [shape = 'u32[]', space=smem, size = 0x4, offset = 0x4, fixed_abs, tag = 'smem constant byte address 0x4 - core index']
  #allocation1 [shape = 'u32[144,128]{1,0:T(1,128)}', space=vmem, size = 0x12000, scoped, tag = 'internal scratch']
  %s0 = inlined_call_operand.hbm [shape: s32[1,128], index: 0, kind: input, shape index: {}]
  %s1 = inlined_call_operand.hbm [shape: f32[4,128], index: 1, kind: input, shape index: {}]
  %s2 = inlined_call_operand.hbm [shape: f32[4,128], index: 2, kind: output, shape index: {}]
  %s3 = sld [smem:[#allocation0]]
  $region30: #{tpu_custom_call.1} parent=0
    _
  %s5 = ssub.s32 1, %s3
  %s6 = scalar_select 0, %s5, %s3
  $region1: #{tpu_custom_call.1} parent=0
    #allocation2 [shape = 'u8[512]{0}', space=vmem, size = 0x400, scoped, tag = 'input window, operand 0, single buffered']
    #allocation3 [shape = 's32[1]{0}', space=sflag, size = 0x4, scoped, tag = 'scoped memory for tpu_custom_call.1']
    #allocation4 [shape = 's32[1]{0}', space=sflag, size = 0x4, scoped, tag = 'scoped memory for tpu_custom_call.1']
    #allocation5 [shape = 'u8[2048]{0}', space=vmem, size = 0x800, scoped, tag = 'input window, operand 1, single buffered']
    #allocation6 [shape = 's32[1]{0}', space=sflag, size = 0x4, scoped, tag = 'scoped memory for tpu_custom_call.1']
    #allocation7 [shape = 'u8[2048]{0}', space=vmem, size = 0x800, scoped, tag = 'output window, operand 0, single buffered']
    %7 = vsyncpa [#allocation3], 0
    %8 = vsyncpa [#allocation6], 0
    %9 = vsyncpa [#allocation4], 0
    // Predicated region
    $region2: #{tpu_custom_call.1} parent=1 // pred_check
      _
    $region3: #{tpu_custom_call.1} parent=1 // pred_check_branch
      %11 = sbr.rel (0) target = $region5
    $region4: #{tpu_custom_call.1} parent=1 // pred_region
      %s13 = ssub.s32 16, 16
      %14 = vsyncadd [#allocation3], %s13
      %s16 = sshll.u32 [#allocation2], 4
      %s17 = int_to_ptr.vmem [resolvable:$true] %s16
      %19 = dma.hbm_to_vmem [thread:$0]  %s0, 16, %s17, [#allocation3]
    $region5: #{tpu_custom_call.1} parent=1 // pred_fallthru
      _
    // Predicated region
    $region6: #{tpu_custom_call.1} parent=1 // pred_check
      _
    $region7: #{tpu_custom_call.1} parent=1 // pred_check_branch
      %21 = sbr.rel (0) target = $region9
    $region8: #{tpu_custom_call.1} parent=1 // pred_region
      %s23 = ssub.s32 64, 64
      %24 = vsyncadd [#allocation6], %s23
      %s26 = sshll.u32 [#allocation5], 4
      %s27 = int_to_ptr.vmem [resolvable:$true] %s26
      %29 = dma.hbm_to_vmem [thread:$0]  %s1, 64, %s27, [#allocation6]
    $region9: #{tpu_custom_call.1} parent=1 // pred_fallthru
      _
    // Predicated region
    $region10: #{tpu_custom_call.1} parent=1 // pred_check
      _
    $region11: #{tpu_custom_call.1} parent=1 // pred_check_branch
      %31 = sbr.rel (0) target = $region13
    $region12: #{tpu_custom_call.1} parent=1 // pred_region
      %32 = dma.done [#allocation3], 16
    $region13: #{tpu_custom_call.1} parent=1 // pred_fallthru
      _
    // Predicated region
    $region14: #{tpu_custom_call.1} parent=1 // pred_check
      _
    $region15: #{tpu_custom_call.1} parent=1 // pred_check_branch
      %34 = sbr.rel (0) target = $region17
    $region16: #{tpu_custom_call.1} parent=1 // pred_region
      %35 = dma.done [#allocation6], 64
    $region17: #{tpu_custom_call.1} parent=1 // pred_fallthru
      _
    %p36 = scmp.eq.s32.totalorder 0, 0
    // Predicated region
    $region18: #{tpu_custom_call.1} parent=1 // pred_check
      %p37 = pneg %p36
    $region19: #{tpu_custom_call.1} parent=1 // pred_check_branch
      %39 = sbr.rel (%p37) target = $region21
    $region20: #{tpu_custom_call.1} parent=1 // pred_region
      %40 = vst [vmem:[#allocation7] sm:$0xf] 0.0
    $region21: #{tpu_custom_call.1} parent=1 // pred_fallthru
      _
    %v41 = vld [vmem:[#allocation2] sm:$0x1]
    %v42 = vlaneseq
    %v43 = vshrl.u32 %v42, 7
    %v44 = vadd.s32 %v43, 8
    %v45 = vadd.s32 %v43, 16
    %v46 = vadd.s32 %v43, 24
    %v47 = vadd.s32 %v43, 32
    %v48 = vadd.s32 %v43, 40
    %v49 = vadd.s32 %v43, 48
    %v50 = vadd.s32 %v43, 56
    %v51 = vadd.s32 %v43, 64
    %v52 = vadd.s32 %v43, 72
    %v53 = vadd.s32 %v43, 80
    %v54 = vadd.s32 %v43, 88
    %v55 = vadd.s32 %v43, 96
    %v56 = vadd.s32 %v43, 104
    %v57 = vadd.s32 %v43, 112
    %v58 = vadd.s32 %v43, 120
    %s59 = smul.u32 0, 128
    %v60 = vstv %s59
    %v61 = vadd.s32 %v43, %v60
    %v62 = vadd.s32 %v44, %v60
    %v63 = vadd.s32 %v45, %v60
    %v64 = vadd.s32 %v46, %v60
    %v65 = vadd.s32 %v47, %v60
    %v66 = vadd.s32 %v48, %v60
    %v67 = vadd.s32 %v49, %v60
    %v68 = vadd.s32 %v50, %v60
    %v69 = vadd.s32 %v51, %v60
    %v70 = vadd.s32 %v52, %v60
    %v71 = vadd.s32 %v53, %v60
    %v72 = vadd.s32 %v54, %v60
    %v73 = vadd.s32 %v55, %v60
    %v74 = vadd.s32 %v56, %v60
    %v75 = vadd.s32 %v57, %v60
    %v76 = vadd.s32 %v58, %v60
    %v77 = vlaneseq
    %v78 = vshrl.u32 %v77, 7
    %v79 = vsub.s32 0, %v78
    %v80 = vrot.slane %v41, %v79
    %vm81 = vcmp.eq.s32.totalorder %v61, %v80
    %vm82 = vcmp.eq.s32.totalorder %v62, %v80
    %vm83 = vcmp.eq.s32.totalorder %v63, %v80
    %vm84 = vcmp.eq.s32.totalorder %v64, %v80
    %vm85 = vcmp.eq.s32.totalorder %v65, %v80
    %vm86 = vcmp.eq.s32.totalorder %v66, %v80
    %vm87 = vcmp.eq.s32.totalorder %v67, %v80
    %vm88 = vcmp.eq.s32.totalorder %v68, %v80
    %vm89 = vcmp.eq.s32.totalorder %v69, %v80
    %vm90 = vcmp.eq.s32.totalorder %v70, %v80
    %vm91 = vcmp.eq.s32.totalorder %v71, %v80
    %vm92 = vcmp.eq.s32.totalorder %v72, %v80
    %vm93 = vcmp.eq.s32.totalorder %v73, %v80
    %vm94 = vcmp.eq.s32.totalorder %v74, %v80
    %vm95 = vcmp.eq.s32.totalorder %v75, %v80
    %vm96 = vcmp.eq.s32.totalorder %v76, %v80
    %v97 = vsel %vm81, 1, 0
    %v98 = vsel %vm82, 1, 0
    %v99 = vsel %vm83, 1, 0
    %v100 = vsel %vm84, 1, 0
    %v101 = vsel %vm85, 1, 0
    %v102 = vsel %vm86, 1, 0
    %v103 = vsel %vm87, 1, 0
    %v104 = vsel %vm88, 1, 0
    %v105 = vsel %vm89, 1, 0
    %v106 = vsel %vm90, 1, 0
    %v107 = vsel %vm91, 1, 0
    %v108 = vsel %vm92, 1, 0
    %v109 = vsel %vm93, 1, 0
    %v110 = vsel %vm94, 1, 0
    %v111 = vsel %vm95, 1, 0
    %v112 = vsel %vm96, 1, 0
    %v113 = vcvt.s32.f32 %v97
    %v114 = vcvt.s32.f32 %v98
    %v115 = vcvt.s32.f32 %v99
    %v116 = vcvt.s32.f32 %v100
    %v117 = vcvt.s32.f32 %v101
    %v118 = vcvt.s32.f32 %v102
    %v119 = vcvt.s32.f32 %v103
    %v120 = vcvt.s32.f32 %v104
    %v121 = vcvt.s32.f32 %v105
    %v122 = vcvt.s32.f32 %v106
    %v123 = vcvt.s32.f32 %v107
    %v124 = vcvt.s32.f32 %v108
    %v125 = vcvt.s32.f32 %v109
    %v126 = vcvt.s32.f32 %v110
    %v127 = vcvt.s32.f32 %v111
    %v128 = vcvt.s32.f32 %v112
    %v129 = vld [vmem:[#allocation7] sm:$0xf]
    %v130 = vld [vmem:[#allocation5] sm:$0xf]
    %131 = vmatprep.subr.mxu0 0.0
    %132 = vmatpush1.msra.mxu0 %v113
    %133 = vmatprep.subr.mxu0 0.0
    %134 = vmatpush1.msra.mxu0 %v114
    %135 = vmatprep.subr.mxu0 0.0
    %136 = vmatpush1.msra.mxu0 %v115
    %137 = vmatprep.subr.mxu0 0.0
    %138 = vmatpush1.msra.mxu0 %v116
    %139 = vmatprep.subr.mxu0 0.0
    %140 = vmatpush1.msra.mxu0 %v117
    %141 = vmatprep.subr.mxu0 0.0
    %142 = vmatpush1.msra.mxu0 %v118
    %143 = vmatprep.subr.mxu0 0.0
    %144 = vmatpush1.msra.mxu0 %v119
    %145 = vmatprep.subr.mxu0 0.0
    %146 = vmatpush1.msra.mxu0 %v120
    %147 = vmatprep.subr.mxu0 0.0
    %148 = vmatpush1.msra.mxu0 %v121
    %149 = vmatprep.subr.mxu0 0.0
    %150 = vmatpush1.msra.mxu0 %v122
    %151 = vmatprep.subr.mxu0 0.0
    %152 = vmatpush1.msra.mxu0 %v123
    %153 = vmatprep.subr.mxu0 0.0
    %154 = vmatpush1.msra.mxu0 %v124
    %155 = vmatprep.subr.mxu0 0.0
    %156 = vmatpush1.msra.mxu0 %v125
    %157 = vmatprep.subr.mxu0 0.0
    %158 = vmatpush1.msra.mxu0 %v126
    %159 = vmatprep.subr.mxu0 0.0
    %160 = vmatpush1.msra.mxu0 %v127
    %161 = vmatprep.subr.mxu0 0.0
    %162 = vmatpush1.msra.mxu0 %v128
    %163 = vmatprep.subr.mxu0 0.0
    %164 = vmatpush1.msra.mxu0 0.0
    %165 = vmatprep.subr.mxu0 0.0
    %166 = vmatpush1.msra.mxu0 0.0
    %167 = vmatprep.subr.mxu0 0.0
    %168 = vmatpush1.msra.mxu0 0.0
    %169 = vmatprep.subr.mxu0 0.0
    %170 = vmatpush1.msra.mxu0 0.0
    %171 = vmatprep.subr.mxu0 0.0
    %172 = vmatpush1.msra.mxu0 0.0
    %173 = vmatprep.subr.mxu0 0.0
    %174 = vmatpush1.msra.mxu0 0.0
    %175 = vmatprep.subr.mxu0 0.0
    %176 = vmatpush1.msra.mxu0 0.0
    %177 = vmatprep.subr.mxu0 0.0
    %178 = vmatpush1.msra.mxu0 0.0
    %179 = vmatprep.subr.mxu0 0.0
    %180 = vmatpush1.msra.mxu0 0.0
    %181 = vmatprep.subr.mxu0 0.0
    %182 = vmatpush1.msra.mxu0 0.0
    %183 = vmatprep.subr.mxu0 0.0
    %184 = vmatpush1.msra.mxu0 0.0
    %185 = vmatprep.subr.mxu0 0.0
    %186 = vmatpush1.msra.mxu0 0.0
    %187 = vmatprep.subr.mxu0 0.0
    %188 = vmatpush1.msra.mxu0 0.0
    %189 = vmatprep.subr.mxu0 0.0
    %190 = vmatpush1.msra.mxu0 0.0
    %191 = vmatprep.subr.mxu0 0.0
    %192 = vmatpush1.msra.mxu0 0.0
    %193 = vmatprep.subr.mxu0 0.0
    %194 = vmatpush1.msra.mxu0 0.0
    %195 = vmatprep.mubr.f32.mxu0 0.0
    %196 = vmatmul.mubr.f32.gmra.mrb[0].mxu0 %v130
    %v197 = vpop.f32.mrb[0].mxu0
    %v198 = vadd.f32 0.0, %v197
    %v199 = vpop.f32.mrb[0].mxu0
    %200 = vdwg.mxu0
    %v201 = vadd.f32 %v129, %v198
    %202 = vst [vmem:[#allocation7] sm:$0xf] %v201
    // Predicated region
    $region22: #{tpu_custom_call.1} parent=1 // pred_check
      _
    $region23: #{tpu_custom_call.1} parent=1 // pred_check_branch
      %204 = sbr.rel (0) target = $region25
    $region24: #{tpu_custom_call.1} parent=1 // pred_region
      %s206 = ssub.s32 64, 64
      %207 = vsyncadd [#allocation4], %s206
      %s209 = sshll.u32 [#allocation7], 4
      %s210 = int_to_ptr.vmem [resolvable:$true] %s209
      %212 = dma.vmem_to_hbm [thread:$0]  %s210, 64, %s2, [#allocation4]
    $region25: #{tpu_custom_call.1} parent=1 // pred_fallthru
      _
    // Predicated region
    $region26: #{tpu_custom_call.1} parent=1 // pred_check
      _
    $region27: #{tpu_custom_call.1} parent=1 // pred_check_branch
      %214 = sbr.rel (0) target = $region29
    $region28: #{tpu_custom_call.1} parent=1 // pred_region
      %215 = dma.done [#allocation4], 64
    $region29: #{tpu_custom_call.1} parent=1 // pred_fallthru
      _
    %216 = vsyncpa [#allocation3], 1
    %217 = vsyncpa [#allocation6], 1
    %218 = vsyncpa [#allocation4], 1

</llo_original>
